<compile_context>
chip_gen: v6e
topology: v6e:2x2x1
jax: 0.10.0
libtpu: 0.0.40
codegen_flags: <defaults>
</compile_context>

<pallas_src>
import math
import numpy as np
import jax
import jax.numpy as jnp
from jax.experimental import pallas as pl
from jax.experimental.pallas import tpu as pltpu

# ----------------------------- sizes -----------------------------------------
B       = 2          # batch
S_TXT   = 8          # text sequence length (BERT stand-in)
S_IMG   = 16         # image tokens (ViT stand-in: 4x4 patches of a 16x16 image)
S_ALL   = S_TXT + S_IMG
H_TEXT  = 256        # text backbone output dim (stand-in for 768)
D       = 128        # opt.tran_dim (stand-in for 768)
D_HALF  = D // 2
VOCAB   = 100
PATCH   = 4
C_IN    = 3
P_DIM   = C_IN * PATCH * PATCH


def _gelu_kernel(x):
    # tanh-approximate GELU: lowers to an EUP tanh instead of an erf VALU chain.
    return jax.nn.gelu(x, approximate=True)


def _gelu_exact(x):
    # ActivateFun._gelu reference: x * 0.5 * (1 + erf(x / sqrt(2)))
    return x * 0.5 * (1.0 + jax.lax.erf(x / math.sqrt(2.0)))


# --------------------- single fused FuseModel kernel --------------------------
def _fuse_kernel(txt_ref, patch_ref, amask_ref,
                 tcw_ref, tcb_ref, pw_ref, pb_ref, w1_ref, b1_ref, w2_ref,
                 txt_out_ref, img_out_ref, fused_out_ref, x_vmem):
    nb, s_txt, h_text = txt_ref.shape
    _, s_img, p_dim = patch_ref.shape
    d = tcw_ref.shape[1]
    n_txt = nb * s_txt
    n_img = nb * s_img
    n_all = n_txt + n_img

    # ---- text_change: Linear(H_TEXT -> D) + GELU (bf16 MXU, f32 accumulate) ----
    xt = txt_ref[...].reshape(n_txt, h_text).astype(jnp.bfloat16)
    t = _gelu_kernel(jnp.dot(xt, tcw_ref[...], preferred_element_type=jnp.float32)
                     + tcb_ref[...])                             # (n_txt, D) f32
    txt_out_ref[...] = t.reshape(nb, s_txt, d)

    # ---- ViT stand-in patch embedding: Linear + tanh (elementwise kept f32) ----
    xp = patch_ref[...].reshape(n_img, p_dim).astype(jnp.bfloat16)
    im = jnp.tanh(jnp.dot(xp, pw_ref[...], preferred_element_type=jnp.float32)
                  + pb_ref[...])                                 # (n_img, D) f32
    img_out_ref[...] = im.reshape(nb, s_img, d)

    # ---- section-major concat: two whole-slab stores (sublane aligned), one reload ----
    x_vmem[0:n_txt, :] = t
    x_vmem[n_txt:n_all, :] = im
    x_bf = x_vmem[...].astype(jnp.bfloat16)                      # (n_all, D) bf16 for the MXU

    # ---- output_attention layer 1 for all tokens at once: Linear(D->D/2)+GELU ----
    h = _gelu_kernel(jnp.dot(x_bf, w1_ref[...],
                             preferred_element_type=jnp.float32) + b1_ref[...])  # (n_all, D/2)

    # ---- lane-dense scores for ALL tokens: (1, D/2) . (n_all, D/2)^T -> (1, n_all) ----
    # NB: the second Linear's bias b2 is a uniform shift -> cancels in softmax.
    a = jax.lax.dot_general(w2_ref[...], h.astype(jnp.bfloat16),
                            dimension_numbers=(((1,), (1,)), ((), ())),
                            preferred_element_type=jnp.float32)

    # ---- block-diagonal masked softmax: one chain for the whole batch ----
    # amask is (nb, n_all): 0 for batch-b's valid tokens, -1e9 for masked tokens
    # and for lanes belonging to other batches.
    a = a + amask_ref[...]                                       # broadcast (1,n)+(nb,n)
    a = a - jnp.max(a, axis=-1, keepdims=True)                   # lane-axis reductions
    e = jnp.exp(a)
    p = e * pl.reciprocal(jnp.sum(e, axis=-1, keepdims=True), approx=True)

    # ---- single block-diagonal pooling matmul + single full (B, D) store ----
    fused_out_ref[...] = jnp.dot(p.astype(jnp.bfloat16), x_bf,
                                 preferred_element_type=jnp.float32)


def fuse_forward_pallas(params, text_encoder, patches, text_image_mask):
    """text_encoder: (B, S_TXT, H_TEXT), patches: (B, S_IMG, P_DIM), mask: (B, >=S_ALL)."""
    Bn, s_txt, h_text = text_encoder.shape
    _, s_img, p_dim = patches.shape
    s_all = s_txt + s_img
    n_all = Bn * s_all
    Dn = params["tc_w"].shape[1]
    Dh = params["att_w1"].shape[1]

    # ---- block-diagonal additive mask in SECTION-major column order -------------
    # column layout: [batch0 text | batch1 text | ... | batch0 image | batch1 image]
    mask = text_image_mask[:, :s_all].astype(jnp.float32)        # (B, s_all)
    col_batch = jnp.concatenate([jnp.repeat(jnp.arange(Bn), s_txt),
                                 jnp.repeat(jnp.arange(Bn), s_img)])          # (n_all,)
    col_tok = jnp.concatenate([jnp.tile(jnp.arange(s_txt), Bn),
                               s_txt + jnp.tile(jnp.arange(s_img), Bn)])      # (n_all,)
    tok_valid = mask[col_batch, col_tok]                                       # (n_all,)
    same_batch = col_batch[None, :] == jnp.arange(Bn)[:, None]                 # (B, n_all)
    addmask = jnp.where(same_batch & (tok_valid[None, :] != 0.0),
                        0.0, -1000000000.0).astype(jnp.float32)                # (B, n_all)

    # bf16 weights: every matmul takes the bf16 MXU fast path; accumulation is f32.
    tc_w = params["tc_w"].astype(jnp.bfloat16)
    pw   = params["patch_w"].astype(jnp.bfloat16)
    w1   = params["att_w1"].astype(jnp.bfloat16)
    w2   = params["att_w2"].reshape(1, Dh).astype(jnp.bfloat16)  # (D/2,1) -> bf16 row; b2 dropped
    tc_b = params["tc_b"].reshape(1, Dn)
    pb   = params["patch_b"].reshape(1, Dn)
    b1   = params["att_b1"].reshape(1, Dh)

    m3 = lambda i: (0, 0, 0)
    m2 = lambda i: (0, 0)
    text_init, image_init, fused = pl.pallas_call(
        _fuse_kernel,
        out_shape=(jax.ShapeDtypeStruct((Bn, s_txt, Dn), jnp.float32),
                   jax.ShapeDtypeStruct((Bn, s_img, Dn), jnp.float32),
                   jax.ShapeDtypeStruct((Bn, Dn), jnp.float32)),
        grid=(1,),                                   # single launch, single grid step
        in_specs=[
            pl.BlockSpec((Bn, s_txt, h_text), m3),   # text features
            pl.BlockSpec((Bn, s_img, p_dim), m3),    # image patches
            pl.BlockSpec((Bn, n_all), m2),           # block-diagonal additive mask
            pl.BlockSpec((h_text, Dn), m2),          # tc_w
            pl.BlockSpec((1, Dn), m2),               # tc_b
            pl.BlockSpec((p_dim, Dn), m2),           # patch_w
            pl.BlockSpec((1, Dn), m2),               # patch_b
            pl.BlockSpec((Dn, Dh), m2),              # att_w1
            pl.BlockSpec((1, Dh), m2),               # att_b1
            pl.BlockSpec((1, Dh), m2),               # att_w2 as a row
        ],
        out_specs=(pl.BlockSpec((Bn, s_txt, Dn), m3),
                   pl.BlockSpec((Bn, s_img, Dn), m3),
                   pl.BlockSpec((Bn, Dn), m2)),
        scratch_shapes=[pltpu.VMEM((n_all, Dn), jnp.float32)],
        compiler_params=pltpu.CompilerParams(dimension_semantics=("arbitrary",)),
    )(text_encoder, patches, addmask, tc_w, tc_b, pw, pb, w1, b1, w2)
    return text_init, image_init, fused


# ------------------------------ FuseModel glue --------------------------------
def init_params(key):
    ks = jax.random.split(key, 8)
    s = lambda fan_in: 1.0 / math.sqrt(fan_in)
    return {
        # stand-in backbones
        "emb_table": jax.random.normal(ks[0], (VOCAB, H_TEXT), jnp.float32) * 0.02,
        "patch_w":   jax.random.normal(ks[1], (P_DIM, D), jnp.float32) * s(P_DIM),
        "patch_b":   jnp.zeros((D,), jnp.float32),
        # text_change = Linear(H_TEXT, D) + GELU
        "tc_w": jax.random.uniform(ks[2], (H_TEXT, D), jnp.float32, -s(H_TEXT), s(H_TEXT)),
        "tc_b": jax.random.uniform(ks[3], (D,), jnp.float32, -s(H_TEXT), s(H_TEXT)),
        # output_attention = Linear(D, D//2) + GELU + Linear(D//2, 1)
        "att_w1": jax.random.uniform(ks[4], (D, D_HALF), jnp.float32, -s(D), s(D)),
        "att_b1": jax.random.uniform(ks[5], (D_HALF,), jnp.float32, -s(D), s(D)),
        "att_w2": jax.random.uniform(ks[6], (D_HALF, 1), jnp.float32, -s(D_HALF), s(D_HALF)),
        "att_b2": jax.random.uniform(ks[7], (1,), jnp.float32, -s(D_HALF), s(D_HALF)),
    }


def fuse_model_forward(params, text_inputs, bert_attention_mask, image_inputs,
                       text_image_mask, text):
    # TODO(synk): frozen pretrained TextModel (BERT) replaced by a deterministic
    # embedding lookup producing last_hidden_state-like features.
    text_encoder = jnp.take(params["emb_table"], text_inputs, axis=0)        # (B, S_TXT, H_TEXT)
    del bert_attention_mask  # consumed by the real (frozen) BERT only

    # TODO(synk): frozen pretrained ViT replaced by a deterministic patch embedding;
    # the NCHW -> patches layout plumbing stays in plain JAX (wrapper-side reshape).
    Bn = image_inputs.shape[0]
    patches = image_inputs.reshape(Bn, C_IN, 4, PATCH, 4, PATCH)
    patches = patches.transpose(0, 2, 4, 1, 3, 5).reshape(Bn, S_IMG, P_DIM)  # (B, S_IMG, P_DIM)

    # single fused Pallas kernel: text_change + patch-embed + concat + 'att' pooling
    text_init, image_init, text_image_output = fuse_forward_pallas(
        params, text_encoder, patches, text_image_mask)

    # TODO(synk): original code uses `text_image_length` (only defined for
    # fuse_type=='ave'); we report the fused sequence length instead.
    cap_length = np.array([S_ALL] * len(text))
    return text_image_output, image_init, text_init, cap_length


# ------------------------------- reference ------------------------------------
def _reference(params, text_inputs, image_inputs, text_image_mask):
    te = jnp.take(params["emb_table"], text_inputs, axis=0)
    ti = _gelu_exact(te @ params["tc_w"] + params["tc_b"])
    Bn = image_inputs.shape[0]
    p = image_inputs.reshape(Bn, C_IN, 4, PATCH, 4, PATCH)
    p = p.transpose(0, 2, 4, 1, 3, 5).reshape(Bn, S_IMG, P_DIM)
    ii = jnp.tanh(p @ params["patch_w"] + params["patch_b"])
    x = jnp.concatenate([ti, ii], axis=1)
    m = text_image_mask[:, :x.shape[1]]
    a = _gelu_exact(x @ params["att_w1"] + params["att_b1"]) @ params["att_w2"] + params["att_b2"]
    a = jnp.where(m[..., None] == 0, -1000000000.0, a)[..., 0]
    a = jax.nn.softmax(a, axis=-1)
    return (a[..., None] * x).sum(axis=1)


# --------------------------------- main ----------------------------------------
if __name__ == "__main__":
    key = jax.random.PRNGKey(0)
    k_p, k_t, k_i = jax.random.split(key, 3)
    params = init_params(k_p)

    text_inputs = jax.random.randint(k_t, (B, S_TXT), 0, VOCAB, dtype=jnp.int32)
    bert_attention_mask = jnp.ones((B, S_TXT), jnp.int32)
    image_inputs = jax.random.normal(k_i, (B, C_IN, 16, 16), jnp.float32)   # NCHW
    text_image_mask = jnp.concatenate(
        [jnp.ones((B, S_ALL - 4), jnp.int32), jnp.zeros((B, 4), jnp.int32)], axis=1)
    text = ["sample text one", "sample text two"]

    out, image_init, text_init, cap_length = fuse_model_forward(
        params, text_inputs, bert_attention_mask, image_inputs, text_image_mask, text)
    jax.block_until_ready(out)

    ref = _reference(params, text_inputs, image_inputs, text_image_mask)
    np.testing.assert_allclose(np.asarray(out), np.asarray(ref), rtol=1e-2, atol=1e-2)

    assert out.shape == (B, D)
    assert image_init.shape == (B, S_IMG, D)
    assert text_init.shape == (B, S_TXT, D)
    assert cap_length.shape == (B,)
    print("KERNEL_OK")
</pallas_src>

<mosaic_0001>
module attributes {stable_mosaic.version = 11 : i64} {
  func.func @_fuse_kernel(%arg0: i32, %arg1: memref<2x8x256xf32, #tpu.memory_space<vmem>>, %arg2: memref<2x16x48xf32, #tpu.memory_space<vmem>>, %arg3: memref<2x48xf32, #tpu.memory_space<vmem>>, %arg4: memref<256x128xbf16, #tpu.memory_space<vmem>>, %arg5: memref<1x128xf32, #tpu.memory_space<vmem>>, %arg6: memref<48x128xbf16, #tpu.memory_space<vmem>>, %arg7: memref<1x128xf32, #tpu.memory_space<vmem>>, %arg8: memref<128x64xbf16, #tpu.memory_space<vmem>>, %arg9: memref<1x64xf32, #tpu.memory_space<vmem>>, %arg10: memref<1x64xbf16, #tpu.memory_space<vmem>>, %arg11: memref<2x8x128xf32, #tpu.memory_space<vmem>>, %arg12: memref<2x16x128xf32, #tpu.memory_space<vmem>>, %arg13: memref<2x128xf32, #tpu.memory_space<vmem>>, %arg14: memref<48x128xf32, #tpu.memory_space<vmem>>) attributes {dimension_semantics = [#tpu.dimension_semantics<arbitrary>], iteration_bounds = array<i64: 1>, scalar_prefetch = 0 : i64, scratch_operands = 1 : i64, tpu.core_type = #tpu.core_type<tc>, window_params = [{pipeline_mode = #tpu.pipeline_mode<synchronous>, transform_indices = @transform_0, window_bounds = array<i64: 2, 8, 256>}, {pipeline_mode = #tpu.pipeline_mode<synchronous>, transform_indices = @transform_1, window_bounds = array<i64: 2, 16, 48>}, {pipeline_mode = #tpu.pipeline_mode<synchronous>, transform_indices = @transform_2, window_bounds = array<i64: 2, 48>}, {pipeline_mode = #tpu.pipeline_mode<synchronous>, transform_indices = @transform_3, window_bounds = array<i64: 256, 128>}, {pipeline_mode = #tpu.pipeline_mode<synchronous>, transform_indices = @transform_4, window_bounds = array<i64: 1, 128>}, {pipeline_mode = #tpu.pipeline_mode<synchronous>, transform_indices = @transform_5, window_bounds = array<i64: 48, 128>}, {pipeline_mode = #tpu.pipeline_mode<synchronous>, transform_indices = @transform_6, window_bounds = array<i64: 1, 128>}, {pipeline_mode = #tpu.pipeline_mode<synchronous>, transform_indices = @transform_7, window_bounds = array<i64: 128, 64>}, {pipeline_mode = #tpu.pipeline_mode<synchronous>, transform_indices = @transform_8, window_bounds = array<i64: 1, 64>}, {pipeline_mode = #tpu.pipeline_mode<synchronous>, transform_indices = @transform_9, window_bounds = array<i64: 1, 64>}, {pipeline_mode = #tpu.pipeline_mode<synchronous>, transform_indices = @transform_10, window_bounds = array<i64: 2, 8, 128>}, {pipeline_mode = #tpu.pipeline_mode<synchronous>, transform_indices = @transform_11, window_bounds = array<i64: 2, 16, 128>}, {pipeline_mode = #tpu.pipeline_mode<synchronous>, transform_indices = @transform_12, window_bounds = array<i64: 2, 128>}]} {
    %c0 = arith.constant 0 : index
    %c0_0 = arith.constant 0 : index
    %c0_1 = arith.constant 0 : index
    %0 = vector.load %arg1[%c0, %c0_0, %c0_1] : memref<2x8x256xf32, #tpu.memory_space<vmem>>, vector<2x8x256xf32>
    %1 = vector.shape_cast %0 : vector<2x8x256xf32> to vector<16x256xf32>
    %2 = arith.truncf %1 : vector<16x256xf32> to vector<16x256xbf16>
    %c0_2 = arith.constant 0 : index
    %c0_3 = arith.constant 0 : index
    %3 = vector.load %arg4[%c0_2, %c0_3] : memref<256x128xbf16, #tpu.memory_space<vmem>>, vector<256x128xbf16>
    %cst = arith.constant dense<0.000000e+00> : vector<16x128xf32>
    %4 = tpu.matmul %2, %3, %cst {dimension_numbers = #tpu.dot_dimension_numbers<[1], [0], [0], [1], [0, 0, 1, 1], [], []>} : vector<16x256xbf16>, vector<256x128xbf16>, vector<16x128xf32> -> vector<16x128xf32>
    %c0_4 = arith.constant 0 : index
    %c0_5 = arith.constant 0 : index
    %5 = vector.load %arg5[%c0_4, %c0_5] : memref<1x128xf32, #tpu.memory_space<vmem>>, vector<1x128xf32>
    %6 = vector.broadcast %5 : vector<1x128xf32> to vector<16x128xf32>
    %7 = arith.addf %4, %6 : vector<16x128xf32>
    %8 = arith.mulf %7, %7 : vector<16x128xf32>
    %9 = arith.mulf %7, %8 : vector<16x128xf32>
    %cst_6 = arith.constant 4.471500e-02 : f32
    %10 = vector.broadcast %cst_6 : f32 to vector<16x128xf32>
    %11 = arith.mulf %10, %9 : vector<16x128xf32>
    %12 = arith.addf %7, %11 : vector<16x128xf32>
    %cst_7 = arith.constant 0.797884583 : f32
    %13 = vector.broadcast %cst_7 : f32 to vector<16x128xf32>
    %14 = arith.mulf %13, %12 : vector<16x128xf32>
    %15 = math.tanh %14 : vector<16x128xf32>
    %cst_8 = arith.constant 1.000000e+00 : f32
    %16 = vector.broadcast %cst_8 : f32 to vector<16x128xf32>
    %17 = arith.addf %16, %15 : vector<16x128xf32>
    %cst_9 = arith.constant 5.000000e-01 : f32
    %18 = vector.broadcast %cst_9 : f32 to vector<16x128xf32>
    %19 = arith.mulf %18, %17 : vector<16x128xf32>
    %20 = arith.mulf %7, %19 : vector<16x128xf32>
    %21 = vector.shape_cast %20 : vector<16x128xf32> to vector<2x8x128xf32>
    %c0_10 = arith.constant 0 : index
    %c0_11 = arith.constant 0 : index
    %c0_12 = arith.constant 0 : index
    %22 = vector.load %arg11[%c0_10, %c0_11, %c0_12] : memref<2x8x128xf32, #tpu.memory_space<vmem>>, vector<2x8x128xf32>
    tpu.vector_store %arg11[%c0_10, %c0_11, %c0_12], %21 {strides = array<i32>} : memref<2x8x128xf32, #tpu.memory_space<vmem>>, vector<2x8x128xf32>,
    %c0_13 = arith.constant 0 : index
    %c0_14 = arith.constant 0 : index
    %c0_15 = arith.constant 0 : index
    %23 = vector.load %arg2[%c0_13, %c0_14, %c0_15] : memref<2x16x48xf32, #tpu.memory_space<vmem>>, vector<2x16x48xf32>
    %24 = vector.shape_cast %23 : vector<2x16x48xf32> to vector<32x48xf32>
    %25 = arith.truncf %24 : vector<32x48xf32> to vector<32x48xbf16>
    %c0_16 = arith.constant 0 : index
    %c0_17 = arith.constant 0 : index
    %26 = vector.load %arg6[%c0_16, %c0_17] : memref<48x128xbf16, #tpu.memory_space<vmem>>, vector<48x128xbf16>
    %cst_18 = arith.constant dense<0.000000e+00> : vector<32x128xf32>
    %27 = tpu.matmul %25, %26, %cst_18 {dimension_numbers = #tpu.dot_dimension_numbers<[1], [0], [0], [1], [0, 0, 1, 1], [], []>} : vector<32x48xbf16>, vector<48x128xbf16>, vector<32x128xf32> -> vector<32x128xf32>
    %c0_19 = arith.constant 0 : index
    %c0_20 = arith.constant 0 : index
    %28 = vector.load %arg7[%c0_19, %c0_20] : memref<1x128xf32, #tpu.memory_space<vmem>>, vector<1x128xf32>
    %29 = vector.broadcast %28 : vector<1x128xf32> to vector<32x128xf32>
    %30 = arith.addf %27, %29 : vector<32x128xf32>
    %31 = math.tanh %30 : vector<32x128xf32>
    %32 = vector.shape_cast %31 : vector<32x128xf32> to vector<2x16x128xf32>
    %c0_21 = arith.constant 0 : index
    %c0_22 = arith.constant 0 : index
    %c0_23 = arith.constant 0 : index
    %33 = vector.load %arg12[%c0_21, %c0_22, %c0_23] : memref<2x16x128xf32, #tpu.memory_space<vmem>>, vector<2x16x128xf32>
    tpu.vector_store %arg12[%c0_21, %c0_22, %c0_23], %32 {strides = array<i32>} : memref<2x16x128xf32, #tpu.memory_space<vmem>>, vector<2x16x128xf32>,
    %c0_24 = arith.constant 0 : index
    %c0_25 = arith.constant 0 : index
    %34 = vector.load %arg14[%c0_24, %c0_25] : memref<48x128xf32, #tpu.memory_space<vmem>>, vector<16x128xf32>
    tpu.vector_store %arg14[%c0_24, %c0_25], %20 {strides = array<i32>} : memref<48x128xf32, #tpu.memory_space<vmem>>, vector<16x128xf32>,
    %c16 = arith.constant 16 : index
    %c0_26 = arith.constant 0 : index
    %35 = vector.load %arg14[%c16, %c0_26] : memref<48x128xf32, #tpu.memory_space<vmem>>, vector<32x128xf32>
    tpu.vector_store %arg14[%c16, %c0_26], %31 {strides = array<i32>} : memref<48x128xf32, #tpu.memory_space<vmem>>, vector<32x128xf32>,
    %c0_27 = arith.constant 0 : index
    %c0_28 = arith.constant 0 : index
    %36 = vector.load %arg14[%c0_27, %c0_28] : memref<48x128xf32, #tpu.memory_space<vmem>>, vector<48x128xf32>
    %37 = arith.truncf %36 : vector<48x128xf32> to vector<48x128xbf16>
    %c0_29 = arith.constant 0 : index
    %c0_30 = arith.constant 0 : index
    %38 = vector.load %arg8[%c0_29, %c0_30] : memref<128x64xbf16, #tpu.memory_space<vmem>>, vector<128x64xbf16>
    %cst_31 = arith.constant dense<0.000000e+00> : vector<48x64xf32>
    %39 = tpu.matmul %37, %38, %cst_31 {dimension_numbers = #tpu.dot_dimension_numbers<[1], [0], [0], [1], [0, 0, 1, 1], [], []>} : vector<48x128xbf16>, vector<128x64xbf16>, vector<48x64xf32> -> vector<48x64xf32>
    %c0_32 = arith.constant 0 : index
    %c0_33 = arith.constant 0 : index
    %40 = vector.load %arg9[%c0_32, %c0_33] : memref<1x64xf32, #tpu.memory_space<vmem>>, vector<1x64xf32>
    %41 = vector.broadcast %40 : vector<1x64xf32> to vector<48x64xf32>
    %42 = arith.addf %39, %41 : vector<48x64xf32>
    %43 = arith.mulf %42, %42 : vector<48x64xf32>
    %44 = arith.mulf %42, %43 : vector<48x64xf32>
    %cst_34 = arith.constant 4.471500e-02 : f32
    %45 = vector.broadcast %cst_34 : f32 to vector<48x64xf32>
    %46 = arith.mulf %45, %44 : vector<48x64xf32>
    %47 = arith.addf %42, %46 : vector<48x64xf32>
    %cst_35 = arith.constant 0.797884583 : f32
    %48 = vector.broadcast %cst_35 : f32 to vector<48x64xf32>
    %49 = arith.mulf %48, %47 : vector<48x64xf32>
    %50 = math.tanh %49 : vector<48x64xf32>
    %cst_36 = arith.constant 1.000000e+00 : f32
    %51 = vector.broadcast %cst_36 : f32 to vector<48x64xf32>
    %52 = arith.addf %51, %50 : vector<48x64xf32>
    %cst_37 = arith.constant 5.000000e-01 : f32
    %53 = vector.broadcast %cst_37 : f32 to vector<48x64xf32>
    %54 = arith.mulf %53, %52 : vector<48x64xf32>
    %55 = arith.mulf %42, %54 : vector<48x64xf32>
    %c0_38 = arith.constant 0 : index
    %c0_39 = arith.constant 0 : index
    %56 = vector.load %arg10[%c0_38, %c0_39] : memref<1x64xbf16, #tpu.memory_space<vmem>>, vector<1x64xbf16>
    %57 = arith.truncf %55 : vector<48x64xf32> to vector<48x64xbf16>
    %cst_40 = arith.constant dense<0.000000e+00> : vector<1x48xf32>
    %58 = tpu.matmul %56, %57, %cst_40 {dimension_numbers = #tpu.dot_dimension_numbers<[1], [1], [0], [0], [0, 0, 1, 0], [], []>} : vector<1x64xbf16>, vector<48x64xbf16>, vector<1x48xf32> -> vector<1x48xf32>
    %c0_41 = arith.constant 0 : index
    %c0_42 = arith.constant 0 : index
    %59 = vector.load %arg3[%c0_41, %c0_42] : memref<2x48xf32, #tpu.memory_space<vmem>>, vector<2x48xf32>
    %60 = vector.broadcast %58 : vector<1x48xf32> to vector<2x48xf32>
    %61 = arith.addf %60, %59 : vector<2x48xf32>
    %cst_43 = arith.constant dense<0xFF800000> : vector<2xf32>
    %62 = vector.multi_reduction <maximumf>, %61, %cst_43 [1] : vector<2x48xf32> to vector<2xf32>
    %63 = vector.shape_cast %62 : vector<2xf32> to vector<2x1xf32>
    %64 = vector.broadcast %63 : vector<2x1xf32> to vector<2x48xf32>
    %65 = arith.subf %61, %64 : vector<2x48xf32>
    %66 = math.exp %65 : vector<2x48xf32>
    %cst_44 = arith.constant dense<0.000000e+00> : vector<2xf32>
    %67 = vector.multi_reduction <add>, %66, %cst_44 [1] : vector<2x48xf32> to vector<2xf32>
    %68 = vector.shape_cast %67 : vector<2xf32> to vector<2x1xf32>
    %69 = tpu.reciprocal %68 {approx = true} : vector<2x1xf32> -> vector<2x1xf32>
    %70 = vector.broadcast %69 : vector<2x1xf32> to vector<2x48xf32>
    %71 = arith.mulf %66, %70 : vector<2x48xf32>
    %72 = arith.truncf %71 : vector<2x48xf32> to vector<2x48xbf16>
    %cst_45 = arith.constant dense<0.000000e+00> : vector<2x128xf32>
    %73 = tpu.matmul %72, %37, %cst_45 {dimension_numbers = #tpu.dot_dimension_numbers<[1], [0], [0], [1], [0, 0, 1, 1], [], []>} : vector<2x48xbf16>, vector<48x128xbf16>, vector<2x128xf32> -> vector<2x128xf32>
    %c0_46 = arith.constant 0 : index
    %c0_47 = arith.constant 0 : index
    %74 = vector.load %arg13[%c0_46, %c0_47] : memref<2x128xf32, #tpu.memory_space<vmem>>, vector<2x128xf32>
    tpu.vector_store %arg13[%c0_46, %c0_47], %73 {strides = array<i32>} : memref<2x128xf32, #tpu.memory_space<vmem>>, vector<2x128xf32>,
    return
  }
  func.func @transform_0(%arg0: i32) -> (i32, i32, i32) {
    %c0_i32 = arith.constant 0 : i32
    %c0_i32_0 = arith.constant 0 : i32
    %c0_i32_1 = arith.constant 0 : i32
    %c0_i32_2 = arith.constant 0 : i32
    return %c0_i32, %c0_i32_0, %c0_i32_1 : i32, i32, i32
  }
  func.func @transform_1(%arg0: i32) -> (i32, i32, i32) {
    %c0_i32 = arith.constant 0 : i32
    %c0_i32_0 = arith.constant 0 : i32
    %c0_i32_1 = arith.constant 0 : i32
    %c0_i32_2 = arith.constant 0 : i32
    return %c0_i32, %c0_i32_0, %c0_i32_1 : i32, i32, i32
  }
  func.func @transform_2(%arg0: i32) -> (i32, i32) {
    %c0_i32 = arith.constant 0 : i32
    %c0_i32_0 = arith.constant 0 : i32
    %c0_i32_1 = arith.constant 0 : i32
    return %c0_i32, %c0_i32_0 : i32, i32
  }
  func.func @transform_3(%arg0: i32) -> (i32, i32) {
    %c0_i32 = arith.constant 0 : i32
    %c0_i32_0 = arith.constant 0 : i32
    %c0_i32_1 = arith.constant 0 : i32
    return %c0_i32, %c0_i32_0 : i32, i32
  }
  func.func @transform_4(%arg0: i32) -> (i32, i32) {
    %c0_i32 = arith.constant 0 : i32
    %c0_i32_0 = arith.constant 0 : i32
    %c0_i32_1 = arith.constant 0 : i32
    return %c0_i32, %c0_i32_0 : i32, i32
  }
  func.func @transform_5(%arg0: i32) -> (i32, i32) {
    %c0_i32 = arith.constant 0 : i32
    %c0_i32_0 = arith.constant 0 : i32
    %c0_i32_1 = arith.constant 0 : i32
    return %c0_i32, %c0_i32_0 : i32, i32
  }
  func.func @transform_6(%arg0: i32) -> (i32, i32) {
    %c0_i32 = arith.constant 0 : i32
    %c0_i32_0 = arith.constant 0 : i32
    %c0_i32_1 = arith.constant 0 : i32
    return %c0_i32, %c0_i32_0 : i32, i32
  }
  func.func @transform_7(%arg0: i32) -> (i32, i32) {
    %c0_i32 = arith.constant 0 : i32
    %c0_i32_0 = arith.constant 0 : i32
    %c0_i32_1 = arith.constant 0 : i32
    return %c0_i32, %c0_i32_0 : i32, i32
  }
  func.func @transform_8(%arg0: i32) -> (i32, i32) {
    %c0_i32 = arith.constant 0 : i32
    %c0_i32_0 = arith.constant 0 : i32
    %c0_i32_1 = arith.constant 0 : i32
    return %c0_i32, %c0_i32_0 : i32, i32
  }
  func.func @transform_9(%arg0: i32) -> (i32, i32) {
    %c0_i32 = arith.constant 0 : i32
    %c0_i32_0 = arith.constant 0 : i32
    %c0_i32_1 = arith.constant 0 : i32
    return %c0_i32, %c0_i32_0 : i32, i32
  }
  func.func @transform_10(%arg0: i32) -> (i32, i32, i32) {
    %c0_i32 = arith.constant 0 : i32
    %c0_i32_0 = arith.constant 0 : i32
    %c0_i32_1 = arith.constant 0 : i32
    %c0_i32_2 = arith.constant 0 : i32
    return %c0_i32, %c0_i32_0, %c0_i32_1 : i32, i32, i32
  }
  func.func @transform_11(%arg0: i32) -> (i32, i32, i32) {
    %c0_i32 = arith.constant 0 : i32
    %c0_i32_0 = arith.constant 0 : i32
    %c0_i32_1 = arith.constant 0 : i32
    %c0_i32_2 = arith.constant 0 : i32
    return %c0_i32, %c0_i32_0, %c0_i32_1 : i32, i32, i32
  }
  func.func @transform_12(%arg0: i32) -> (i32, i32) {
    %c0_i32 = arith.constant 0 : i32
    %c0_i32_0 = arith.constant 0 : i32
    %c0_i32_1 = arith.constant 0 : i32
    return %c0_i32, %c0_i32_0 : i32, i32
  }
}

</mosaic_0001>

<llo_original>
// kernel: tpu_custom_call.1
$region0: #{tpu_custom_call.1}
  #allocation0 [shape = 'u32[]', space=smem, size = 0x4, offset = 0x4, fixed_abs, tag = 'smem constant byte address 0x4 - core index']
  #allocation1 [shape = 'u32[144,128]{1,0:T(1,128)}', space=vmem, size = 0x12000, scoped, tag = 'internal scratch']
  #allocation2 [shape = 'f32[48,128]{1,0:T(8,128)}', space=vmem, size = 0x6000, scoped, tag = 'scratch operand']
  %s0 = inlined_call_operand.vmem [shape: f32[2,8,256], index: 0, kind: input, shape index: {}]
  %s1 = inlined_call_operand.vmem [shape: f32[2,16,48], index: 1, kind: input, shape index: {}]
  %s2 = inlined_call_operand.vmem [shape: f32[2,48], index: 2, kind: input, shape index: {}]
  %s3 = inlined_call_operand.hbm [shape: bf16[256,128], index: 3, kind: input, shape index: {}]
  %s4 = inlined_call_operand.vmem [shape: f32[1,128], index: 4, kind: input, shape index: {}]
  %s5 = inlined_call_operand.vmem [shape: bf16[48,128], index: 5, kind: input, shape index: {}]
  %s6 = inlined_call_operand.vmem [shape: f32[1,128], index: 6, kind: input, shape index: {}]
  %s7 = inlined_call_operand.vmem [shape: bf16[128,64], index: 7, kind: input, shape index: {}]
  %s8 = inlined_call_operand.vmem [shape: f32[1,64], index: 8, kind: input, shape index: {}]
  %s9 = inlined_call_operand.vmem [shape: bf16[1,64], index: 9, kind: input, shape index: {}]
  %s10 = inlined_call_operand.hbm [shape: f32[2,8,128], index: 10, kind: output, shape index: {0}]
  %s11 = inlined_call_operand.hbm [shape: f32[2,16,128], index: 11, kind: output, shape index: {1}]
  %s12 = inlined_call_operand.hbm [shape: f32[2,128], index: 12, kind: output, shape index: {2}]
  %13 = xla_tuple %s10, %s11, %s12
  %s14 = sld [smem:[#allocation0]]
  $region70: #{tpu_custom_call.1} parent=0
    _
  %s16 = ssub.s32 1, %s14
  %s17 = scalar_select 0, %s16, %s14
  $region1: #{tpu_custom_call.1} parent=0
    #allocation3 [shape = 'u8[65536]{0}', space=vmem, size = 0x10000, scoped, tag = 'input window, operand 3, single buffered']
    #allocation4 [shape = 's32[1]{0}', space=sflag, size = 0x4, scoped, tag = 'scoped memory for tpu_custom_call.1']
    #allocation5 [shape = 's32[1]{0}', space=sflag, size = 0x4, scoped, tag = 'scoped memory for tpu_custom_call.1']
    #allocation6 [shape = 'u8[8192]{0}', space=vmem, size = 0x2000, scoped, tag = 'output window, operand 0, single buffered']
    #allocation7 [shape = 'u8[16384]{0}', space=vmem, size = 0x4000, scoped, tag = 'output window, operand 1, single buffered']
    #allocation8 [shape = 's32[1]{0}', space=sflag, size = 0x4, scoped, tag = 'scoped memory for tpu_custom_call.1']
    #allocation9 [shape = 'u8[1024]{0}', space=vmem, size = 0x400, scoped, tag = 'output window, operand 2, single buffered']
    %18 = vsyncpa [#allocation4], 0
    %19 = vsyncpa [#allocation5], 0
    %20 = vsyncpa [#allocation8], 0
    // Predicated region
    $region2: #{tpu_custom_call.1} parent=1 // pred_check
      _
    $region3: #{tpu_custom_call.1} parent=1 // pred_check_branch
      %22 = sbr.rel (0) target = $region5
    $region4: #{tpu_custom_call.1} parent=1 // pred_region
      _
    $region5: #{tpu_custom_call.1} parent=1 // pred_fallthru
      _
    // Predicated region
    $region6: #{tpu_custom_call.1} parent=1 // pred_check
      _
    $region7: #{tpu_custom_call.1} parent=1 // pred_check_branch
      %24 = sbr.rel (0) target = $region9
    $region8: #{tpu_custom_call.1} parent=1 // pred_region
      _
    $region9: #{tpu_custom_call.1} parent=1 // pred_fallthru
      _
    // Predicated region
    $region10: #{tpu_custom_call.1} parent=1 // pred_check
      _
    $region11: #{tpu_custom_call.1} parent=1 // pred_check_branch
      %26 = sbr.rel (0) target = $region13
    $region12: #{tpu_custom_call.1} parent=1 // pred_region
      _
    $region13: #{tpu_custom_call.1} parent=1 // pred_fallthru
      _
    // Predicated region
    $region14: #{tpu_custom_call.1} parent=1 // pred_check
      _
    $region15: #{tpu_custom_call.1} parent=1 // pred_check_branch
      %28 = sbr.rel (0) target = $region17
    $region16: #{tpu_custom_call.1} parent=1 // pred_region
      %s30 = ssub.s32 2048, 2048
      %31 = vsyncadd [#allocation4], %s30
      %s32 = sshll.u32 [#allocation3], 4
      %s33 = int_to_ptr.vmem [resolvable:$true] %s32
      %38 = dma.hbm_to_vmem [thread:$0]  %s3, 2048, %s33, [#allocation4], 64, 64, 4
    $region17: #{tpu_custom_call.1} parent=1 // pred_fallthru
      _
    // Predicated region
    $region18: #{tpu_custom_call.1} parent=1 // pred_check
      _
    $region19: #{tpu_custom_call.1} parent=1 // pred_check_branch
      %40 = sbr.rel (0) target = $region21
    $region20: #{tpu_custom_call.1} parent=1 // pred_region
      _
    $region21: #{tpu_custom_call.1} parent=1 // pred_fallthru
      _
    // Predicated region
    $region22: #{tpu_custom_call.1} parent=1 // pred_check
      _
    $region23: #{tpu_custom_call.1} parent=1 // pred_check_branch
      %42 = sbr.rel (0) target = $region25
    $region24: #{tpu_custom_call.1} parent=1 // pred_region
      _
    $region25: #{tpu_custom_call.1} parent=1 // pred_fallthru
      _
    // Predicated region
    $region26: #{tpu_custom_call.1} parent=1 // pred_check
      _
    $region27: #{tpu_custom_call.1} parent=1 // pred_check_branch
      %44 = sbr.rel (0) target = $region29
    $region28: #{tpu_custom_call.1} parent=1 // pred_region
      _
    $region29: #{tpu_custom_call.1} parent=1 // pred_fallthru
      _
    // Predicated region
    $region30: #{tpu_custom_call.1} parent=1 // pred_check
      _
    $region31: #{tpu_custom_call.1} parent=1 // pred_check_branch
      %46 = sbr.rel (0) target = $region33
    $region32: #{tpu_custom_call.1} parent=1 // pred_region
      _
    $region33: #{tpu_custom_call.1} parent=1 // pred_fallthru
      _
    // Predicated region
    $region34: #{tpu_custom_call.1} parent=1 // pred_check
      _
    $region35: #{tpu_custom_call.1} parent=1 // pred_check_branch
      %48 = sbr.rel (0) target = $region37
    $region36: #{tpu_custom_call.1} parent=1 // pred_region
      _
    $region37: #{tpu_custom_call.1} parent=1 // pred_fallthru
      _
    // Predicated region
    $region38: #{tpu_custom_call.1} parent=1 // pred_check
      _
    $region39: #{tpu_custom_call.1} parent=1 // pred_check_branch
      %50 = sbr.rel (0) target = $region41
    $region40: #{tpu_custom_call.1} parent=1 // pred_region
      _
    $region41: #{tpu_custom_call.1} parent=1 // pred_fallthru
      _
    // Predicated region
    $region42: #{tpu_custom_call.1} parent=1 // pred_check
      _
    $region43: #{tpu_custom_call.1} parent=1 // pred_check_branch
      %52 = sbr.rel (0) target = $region45
    $region44: #{tpu_custom_call.1} parent=1 // pred_region
      %53 = dma.done [#allocation4], 2048
    $region45: #{tpu_custom_call.1} parent=1 // pred_fallthru
      _
    %v55 = vld [vmem:[%s0] sm:$0xff]
    %v56 = vld [vmem:[%s0 + $0x8] sm:$0xff]
    %v57 = vld [vmem:[%s0 + $0x10] sm:$0xff]
    %v58 = vld [vmem:[%s0 + $0x18] sm:$0xff]
    %v59 = vpack.c.bf16 %v57, %v55
    %v60 = vpack.c.bf16 %v58, %v56
    %v61 = vld [vmem:[#allocation3] sm:$0xf]
    %v62 = vld [vmem:[#allocation3 + $0x4] sm:$0xf]
    %v63 = vld [vmem:[#allocation3 + $0x8] sm:$0xf]
    %v64 = vld [vmem:[#allocation3 + $0xc] sm:$0xf]
    %v65 = vld [vmem:[#allocation3 + $0x10] sm:$0xf]
    %v66 = vld [vmem:[#allocation3 + $0x14] sm:$0xf]
    %v67 = vld [vmem:[#allocation3 + $0x18] sm:$0xf]
    %v68 = vld [vmem:[#allocation3 + $0x1c] sm:$0xf]
    %v69 = vld [vmem:[#allocation3 + $0x20] sm:$0xf]
    %v70 = vld [vmem:[#allocation3 + $0x24] sm:$0xf]
    %v71 = vld [vmem:[#allocation3 + $0x28] sm:$0xf]
    %v72 = vld [vmem:[#allocation3 + $0x2c] sm:$0xf]
    %v73 = vld [vmem:[#allocation3 + $0x30] sm:$0xf]
    %v74 = vld [vmem:[#allocation3 + $0x34] sm:$0xf]
    %v75 = vld [vmem:[#allocation3 + $0x38] sm:$0xf]
    %v76 = vld [vmem:[#allocation3 + $0x3c] sm:$0xf]
    %v77 = vld [vmem:[#allocation3 + $0x40] sm:$0xf]
    %v78 = vld [vmem:[#allocation3 + $0x44] sm:$0xf]
    %v79 = vld [vmem:[#allocation3 + $0x48] sm:$0xf]
    %v80 = vld [vmem:[#allocation3 + $0x4c] sm:$0xf]
    %v81 = vld [vmem:[#allocation3 + $0x50] sm:$0xf]
    %v82 = vld [vmem:[#allocation3 + $0x54] sm:$0xf]
    %v83 = vld [vmem:[#allocation3 + $0x58] sm:$0xf]
    %v84 = vld [vmem:[#allocation3 + $0x5c] sm:$0xf]
    %v85 = vld [vmem:[#allocation3 + $0x60] sm:$0xf]
    %v86 = vld [vmem:[#allocation3 + $0x64] sm:$0xf]
    %v87 = vld [vmem:[#allocation3 + $0x68] sm:$0xf]
    %v88 = vld [vmem:[#allocation3 + $0x6c] sm:$0xf]
    %v89 = vld [vmem:[#allocation3 + $0x70] sm:$0xf]
    %v90 = vld [vmem:[#allocation3 + $0x74] sm:$0xf]
    %v91 = vld [vmem:[#allocation3 + $0x78] sm:$0xf]
    %v92 = vld [vmem:[#allocation3 + $0x7c] sm:$0xf]
    %v93 = vld [vmem:[%s4] sm:$0x1]
    %v95 = vlaneseq
    %v96 = vshrl.u32 %v95, 7
    %v97 = vsub.s32 0, %v96
    %v98 = vrot.slane %v93, %v97
    %v132 = vunpack.c.l.b16 %v61
    %v133 = vunpack.c.l.b16 %v62
    %v134 = vunpack.c.l.b16 %v63
    %v135 = vunpack.c.l.b16 %v64
    %v136 = vunpack.c.l.b16 %v65
    %v137 = vunpack.c.l.b16 %v66
    %v138 = vunpack.c.l.b16 %v67
    %v139 = vunpack.c.l.b16 %v68
    %v140 = vunpack.c.l.b16 %v69
    %v141 = vunpack.c.l.b16 %v70
    %v142 = vunpack.c.l.b16 %v71
    %v143 = vunpack.c.l.b16 %v72
    %v144 = vunpack.c.l.b16 %v73
    %v145 = vunpack.c.l.b16 %v74
    %v146 = vunpack.c.l.b16 %v75
    %v147 = vunpack.c.l.b16 %v76
    %v148 = vunpack.c.l.b16 %v77
    %v149 = vunpack.c.l.b16 %v78
    %v150 = vunpack.c.l.b16 %v79
    %v151 = vunpack.c.l.b16 %v80
    %v152 = vunpack.c.l.b16 %v81
    %v153 = vunpack.c.l.b16 %v82
    %v154 = vunpack.c.l.b16 %v83
    %v155 = vunpack.c.l.b16 %v84
    %v156 = vunpack.c.l.b16 %v85
    %v157 = vunpack.c.l.b16 %v86
    %v158 = vunpack.c.l.b16 %v87
    %v159 = vunpack.c.l.b16 %v88
    %v160 = vunpack.c.l.b16 %v89
    %v161 = vunpack.c.l.b16 %v90
    %v162 = vunpack.c.l.b16 %v91
    %v163 = vunpack.c.l.b16 %v92
    %v164 = vpack.c.b16 %v133, %v132
    %v165 = vpack.c.b16 %v135, %v134
    %v166 = vpack.c.b16 %v137, %v136
    %v167 = vpack.c.b16 %v139, %v138
    %v168 = vpack.c.b16 %v141, %v140
    %v169 = vpack.c.b16 %v143, %v142
    %v170 = vpack.c.b16 %v145, %v144
    %v171 = vpack.c.b16 %v147, %v146
    %v172 = vpack.c.b16 %v149, %v148
    %v173 = vpack.c.b16 %v151, %v150
    %v174 = vpack.c.b16 %v153, %v152
    %v175 = vpack.c.b16 %v155, %v154
    %v176 = vpack.c.b16 %v157, %v156
    %v177 = vpack.c.b16 %v159, %v158
    %v178 = vpack.c.b16 %v161, %v160
    %v179 = vpack.c.b16 %v163, %v162
    %196 = vmatprep.subr.bf16.mxu0 0
    %197 = vmatpush1.bf16.msra.mxu0 %v171
    %198 = vmatprep.subr.bf16.mxu0 0
    %199 = vmatpush1.bf16.msra.mxu0 %v170
    %200 = vmatprep.subr.bf16.mxu0 0
    %201 = vmatpush1.bf16.msra.mxu0 %v169
    %202 = vmatprep.subr.bf16.mxu0 0
    %203 = vmatpush1.bf16.msra.mxu0 %v168
    %204 = vmatprep.subr.bf16.mxu0 0
    %205 = vmatpush1.bf16.msra.mxu0 %v167
    %206 = vmatprep.subr.bf16.mxu0 0
    %207 = vmatpush1.bf16.msra.mxu0 %v166
    %208 = vmatprep.subr.bf16.mxu0 0
    %209 = vmatpush1.bf16.msra.mxu0 %v165
    %210 = vmatprep.subr.bf16.mxu0 0
    %211 = vmatpush1.bf16.msra.mxu0 %v164
    %212 = vmatprep.subr.bf16.mxu0 0
    %213 = vmatpush2.bf16.msra.mxu0 %v179
    %214 = vmatprep.subr.bf16.mxu0 0
    %215 = vmatpush2.bf16.msra.mxu0 %v178
    %216 = vmatprep.subr.bf16.mxu0 0
    %217 = vmatpush2.bf16.msra.mxu0 %v177
    %218 = vmatprep.subr.bf16.mxu0 0
    %219 = vmatpush2.bf16.msra.mxu0 %v176
    %220 = vmatprep.subr.bf16.mxu0 0
    %221 = vmatpush2.bf16.msra.mxu0 %v175
    %222 = vmatprep.subr.bf16.mxu0 0
    %223 = vmatpush2.bf16.msra.mxu0 %v174
    %224 = vmatprep.subr.bf16.mxu0 0
    %225 = vmatpush2.bf16.msra.mxu0 %v173
    %226 = vmatprep.subr.bf16.mxu0 0
    %227 = vmatpush2.bf16.msra.mxu0 %v172
    %228 = vmatprep.mubr.bf16.mxu0 %v60
    %229 = vmatmul.mubr.bf16.gmra.mxu0 %v59
    %v230 = vpop.f32.mrf.mxu0
    %v231 = vadd.f32 %v98, %v230
    %v232 = vpop.f32.mrf.mxu0
    %v233 = vpop.f32.mrf.mxu0
    %v234 = vadd.f32 %v98, %v233
    %v235 = vpop.f32.mrf.mxu0
    %236 = vdwg.mxu0
    %v237 = vmul.f32 %v231, %v231
    %v238 = vmul.f32 %v234, %v234
    %v239 = vmul.f32 %v231, %v237
    %v240 = vmul.f32 %v234, %v238
    %v241 = vmul.f32 %v239, 0.044715
    %v242 = vmul.f32 %v240, 0.044715
    %v243 = vadd.f32 %v231, %v241
    %v244 = vadd.f32 %v234, %v242
    %v245 = vmul.f32 %v243, 0.7978846
    %v246 = vmul.f32 %v244, 0.7978846
    %v247 = vtanh.pop %v245
    %v248 = vtanh.pop %v246
    %v249 = vadd.f32 %v247, 1.0
    %v250 = vadd.f32 %v248, 1.0
    %v251 = vmul.f32 %v249, 0.5
    %v252 = vmul.f32 %v250, 0.5
    %v253 = vmul.f32 %v231, %v251
    %v254 = vmul.f32 %v234, %v252
    %255 = vst [vmem:[#allocation6] sm:$0xff] %v253
    %256 = vst [vmem:[#allocation6 + $0x8] sm:$0xff] %v254
    %v257 = vld [vmem:[%s1] sm:$0xff]
    %v258 = vld [vmem:[%s1 + $0x8] sm:$0xff]
    %v259 = vld [vmem:[%s1 + $0x10] sm:$0xff]
    %v260 = vld [vmem:[%s1 + $0x18] sm:$0xff]
    %v261 = vpack.c.bf16 %v258, %v257
    %v262 = vpack.c.bf16 %v260, %v259
    %v263 = vld [vmem:[%s5] sm:$0xf]
    %v264 = vld [vmem:[%s5 + $0x4] sm:$0xf]
    %v265 = vld [vmem:[%s5 + $0x8] sm:$0xf]
    %v266 = vld [vmem:[%s5 + $0xc] sm:$0xf]
    %v267 = vld [vmem:[%s5 + $0x10] sm:$0xf]
    %v268 = vld [vmem:[%s5 + $0x14] sm:$0xf]
    %v269 = vld [vmem:[%s6] sm:$0x1]
    %v271 = vlaneseq
    %v272 = vshrl.u32 %v271, 7
    %v273 = vsub.s32 0, %v272
    %v274 = vrot.slane %v269, %v273
    %v282 = vunpack.c.l.b16 %v263
    %v283 = vunpack.c.l.b16 %v264
    %v284 = vunpack.c.l.b16 %v265
    %v285 = vunpack.c.l.b16 %v266
    %v286 = vunpack.c.l.b16 %v267
    %v287 = vunpack.c.l.b16 %v268
    %v288 = vpack.c.b16 %v283, %v282
    %v289 = vpack.c.b16 %v285, %v284
    %v290 = vpack.c.b16 %v287, %v286
    %vm294 = vcmask 392192
    %v296 = vsel %vm294, %v261, 0
    %v299 = vsel %vm294, %v262, 0
    %301 = vmatprep.subr.bf16.mxu0 0
    %302 = vmatpush1.bf16.msra.mxu0 0
    %303 = vmatprep.subr.bf16.mxu0 0
    %304 = vmatpush1.bf16.msra.mxu0 0
    %305 = vmatprep.subr.bf16.mxu0 0
    %306 = vmatpush1.bf16.msra.mxu0 0
    %307 = vmatprep.subr.bf16.mxu0 0
    %308 = vmatpush1.bf16.msra.mxu0 0
    %309 = vmatprep.subr.bf16.mxu0 0
    %310 = vmatpush1.bf16.msra.mxu0 0
    %311 = vmatprep.subr.bf16.mxu0 0
    %312 = vmatpush1.bf16.msra.mxu0 %v290
    %313 = vmatprep.subr.bf16.mxu0 0
    %314 = vmatpush1.bf16.msra.mxu0 %v289
    %315 = vmatprep.subr.bf16.mxu0 0
    %316 = vmatpush1.bf16.msra.mxu0 %v288
    %317 = vmatprep.subr.bf16.mxu0 0
    %318 = vmatpush2.bf16.msra.mxu0 0
    %319 = vmatprep.subr.bf16.mxu0 0
    %320 = vmatpush2.bf16.msra.mxu0 0
    %321 = vmatprep.subr.bf16.mxu0 0
    %322 = vmatpush2.bf16.msra.mxu0 0
    %323 = vmatprep.subr.bf16.mxu0 0
    %324 = vmatpush2.bf16.msra.mxu0 0
    %325 = vmatprep.subr.bf16.mxu0 0
    %326 = vmatpush2.bf16.msra.mxu0 0
    %327 = vmatprep.subr.bf16.mxu0 0
    %328 = vmatpush2.bf16.msra.mxu0 0
    %329 = vmatprep.subr.bf16.mxu0 0
    %330 = vmatpush2.bf16.msra.mxu0 0
    %331 = vmatprep.subr.bf16.mxu0 0
    %332 = vmatpush2.bf16.msra.mxu0 0
    %333 = vmatprep.mubr.bf16.mxu0 0
    %334 = vmatmul.mubr.bf16.gmra.mxu0 %v296
    %v335 = vpop.f32.mrf.mxu0
    %v336 = vadd.f32 %v274, %v335
    %v337 = vpop.f32.mrf.mxu0
    %v338 = vpop.f32.mrf.mxu0
    %v339 = vadd.f32 %v274, %v338
    %v340 = vpop.f32.mrf.mxu0
    %341 = vmatprep.mubr.bf16.mxu0 0
    %342 = vmatmul.mubr.bf16.gmra.mxu0 %v299
    %v343 = vpop.f32.mrf.mxu0
    %v344 = vadd.f32 %v274, %v343
    %v345 = vpop.f32.mrf.mxu0
    %v346 = vpop.f32.mrf.mxu0
    %v347 = vadd.f32 %v274, %v346
    %v348 = vpop.f32.mrf.mxu0
    %349 = vdwg.mxu0
    %v350 = vtanh.pop %v336
    %v351 = vtanh.pop %v339
    %v352 = vtanh.pop %v344
    %v353 = vtanh.pop %v347
    %354 = vst [vmem:[#allocation7] sm:$0xff] %v350
    %355 = vst [vmem:[#allocation7 + $0x8] sm:$0xff] %v351
    %356 = vst [vmem:[#allocation7 + $0x10] sm:$0xff] %v352
    %357 = vst [vmem:[#allocation7 + $0x18] sm:$0xff] %v353
    %358 = vst [vmem:[#allocation2] sm:$0xff] %v253
    %359 = vst [vmem:[#allocation2 + $0x8] sm:$0xff] %v254
    %360 = vst [vmem:[#allocation2 + $0x10] sm:$0xff] %v350
    %361 = vst [vmem:[#allocation2 + $0x18] sm:$0xff] %v351
    %362 = vst [vmem:[#allocation2 + $0x20] sm:$0xff] %v352
    %363 = vst [vmem:[#allocation2 + $0x28] sm:$0xff] %v353
    %v364 = vld [vmem:[#allocation2] sm:$0xff]
    %v365 = vld [vmem:[#allocation2 + $0x8] sm:$0xff]
    %v366 = vld [vmem:[#allocation2 + $0x10] sm:$0xff]
    %v367 = vld [vmem:[#allocation2 + $0x18] sm:$0xff]
    %v368 = vld [vmem:[#allocation2 + $0x20] sm:$0xff]
    %v369 = vld [vmem:[#allocation2 + $0x28] sm:$0xff]
    %v370 = vpack.c.bf16 %v365, %v364
    %v371 = vpack.c.bf16 %v367, %v366
    %v372 = vpack.c.bf16 %v369, %v368
    %v373 = vld [vmem:[%s7] sm:$0xf]
    %v374 = vld [vmem:[%s7 + $0x4] sm:$0xf]
    %v375 = vld [vmem:[%s7 + $0x8] sm:$0xf]
    %v376 = vld [vmem:[%s7 + $0xc] sm:$0xf]
    %v377 = vld [vmem:[%s7 + $0x10] sm:$0xf]
    %v378 = vld [vmem:[%s7 + $0x14] sm:$0xf]
    %v379 = vld [vmem:[%s7 + $0x18] sm:$0xf]
    %v380 = vld [vmem:[%s7 + $0x1c] sm:$0xf]
    %v381 = vld [vmem:[%s7 + $0x20] sm:$0xf]
    %v382 = vld [vmem:[%s7 + $0x24] sm:$0xf]
    %v383 = vld [vmem:[%s7 + $0x28] sm:$0xf]
    %v384 = vld [vmem:[%s7 + $0x2c] sm:$0xf]
    %v385 = vld [vmem:[%s7 + $0x30] sm:$0xf]
    %v386 = vld [vmem:[%s7 + $0x34] sm:$0xf]
    %v387 = vld [vmem:[%s7 + $0x38] sm:$0xf]
    %v388 = vld [vmem:[%s7 + $0x3c] sm:$0xf]
    %v389 = vld [vmem:[%s8] sm:$0x1]
    %v391 = vlaneseq
    %v392 = vshrl.u32 %v391, 7
    %v393 = vsub.s32 0, %v392
    %v394 = vrot.slane %v389, %v393
    %v412 = vunpack.c.l.b16 %v373
    %v413 = vunpack.c.l.b16 %v374
    %v414 = vunpack.c.l.b16 %v375
    %v415 = vunpack.c.l.b16 %v376
    %v416 = vunpack.c.l.b16 %v377
    %v417 = vunpack.c.l.b16 %v378
    %v418 = vunpack.c.l.b16 %v379
    %v419 = vunpack.c.l.b16 %v380
    %v420 = vunpack.c.l.b16 %v381
    %v421 = vunpack.c.l.b16 %v382
    %v422 = vunpack.c.l.b16 %v383
    %v423 = vunpack.c.l.b16 %v384
    %v424 = vunpack.c.l.b16 %v385
    %v425 = vunpack.c.l.b16 %v386
    %v426 = vunpack.c.l.b16 %v387
    %v427 = vunpack.c.l.b16 %v388
    %v428 = vpack.c.b16 %v413, %v412
    %v429 = vpack.c.b16 %v415, %v414
    %v430 = vpack.c.b16 %v417, %v416
    %v431 = vpack.c.b16 %v419, %v418
    %v432 = vpack.c.b16 %v421, %v420
    %v433 = vpack.c.b16 %v423, %v422
    %v434 = vpack.c.b16 %v425, %v424
    %v435 = vpack.c.b16 %v427, %v426
    %444 = vmatprep.subr.bf16.mxu0 0
    %445 = vmatpush1.bf16.msra.mxu0 %v435
    %446 = vmatprep.subr.bf16.mxu0 0
    %447 = vmatpush1.bf16.msra.mxu0 %v434
    %448 = vmatprep.subr.bf16.mxu0 0
    %449 = vmatpush1.bf16.msra.mxu0 %v433
    %450 = vmatprep.subr.bf16.mxu0 0
    %451 = vmatpush1.bf16.msra.mxu0 %v432
    %452 = vmatprep.subr.bf16.mxu0 0
    %453 = vmatpush1.bf16.msra.mxu0 %v431
    %454 = vmatprep.subr.bf16.mxu0 0
    %455 = vmatpush1.bf16.msra.mxu0 %v430
    %456 = vmatprep.subr.bf16.mxu0 0
    %457 = vmatpush1.bf16.msra.mxu0 %v429
    %458 = vmatprep.subr.bf16.mxu0 0
    %459 = vmatpush1.bf16.msra.mxu0 %v428
    %460 = vmatprep.subr.bf16.mxu0 0
    %461 = vmatpush2.bf16.msra.mxu0 0
    %462 = vmatprep.subr.bf16.mxu0 0
    %463 = vmatpush2.bf16.msra.mxu0 0
    %464 = vmatprep.subr.bf16.mxu0 0
    %465 = vmatpush2.bf16.msra.mxu0 0
    %466 = vmatprep.subr.bf16.mxu0 0
    %467 = vmatpush2.bf16.msra.mxu0 0
    %468 = vmatprep.subr.bf16.mxu0 0
    %469 = vmatpush2.bf16.msra.mxu0 0
    %470 = vmatprep.subr.bf16.mxu0 0
    %471 = vmatpush2.bf16.msra.mxu0 0
    %472 = vmatprep.subr.bf16.mxu0 0
    %473 = vmatpush2.bf16.msra.mxu0 0
    %474 = vmatprep.subr.bf16.mxu0 0
    %475 = vmatpush2.bf16.msra.mxu0 0
    %476 = vmatprep.mubr.bf16.mxu0 0
    %477 = vmatmul.mubr.bf16.gmra.mxu0 %v370
    %v478 = vpop.f32.mrf.mxu0
    %v479 = vadd.f32 %v394, %v478
    %v480 = vpop.f32.mrf.mxu0
    %v481 = vpop.f32.mrf.mxu0
    %v482 = vadd.f32 %v394, %v481
    %v483 = vpop.f32.mrf.mxu0
    %484 = vmatprep.mubr.bf16.mxu0 0
    %485 = vmatmul.mubr.bf16.gmra.mxu0 %v371
    %v486 = vpop.f32.mrf.mxu0
    %v487 = vadd.f32 %v394, %v486
    %v488 = vpop.f32.mrf.mxu0
    %v489 = vpop.f32.mrf.mxu0
    %v490 = vadd.f32 %v394, %v489
    %v491 = vpop.f32.mrf.mxu0
    %492 = vmatprep.mubr.bf16.mxu0 0
    %493 = vmatmul.mubr.bf16.gmra.mxu0 %v372
    %v494 = vpop.f32.mrf.mxu0
    %v495 = vadd.f32 %v394, %v494
    %v496 = vpop.f32.mrf.mxu0
    %v497 = vpop.f32.mrf.mxu0
    %v498 = vadd.f32 %v394, %v497
    %v499 = vpop.f32.mrf.mxu0
    %500 = vdwg.mxu0
    %v501 = vmul.f32 %v479, %v479
    %v502 = vmul.f32 %v482, %v482
    %v503 = vmul.f32 %v487, %v487
    %v504 = vmul.f32 %v490, %v490
    %v505 = vmul.f32 %v495, %v495
    %v506 = vmul.f32 %v498, %v498
    %v507 = vmul.f32 %v479, %v501
    %v508 = vmul.f32 %v482, %v502
    %v509 = vmul.f32 %v487, %v503
    %v510 = vmul.f32 %v490, %v504
    %v511 = vmul.f32 %v495, %v505
    %v512 = vmul.f32 %v498, %v506
    %v513 = vmul.f32 %v507, 0.044715
    %v514 = vmul.f32 %v508, 0.044715
    %v515 = vmul.f32 %v509, 0.044715
    %v516 = vmul.f32 %v510, 0.044715
    %v517 = vmul.f32 %v511, 0.044715
    %v518 = vmul.f32 %v512, 0.044715
    %v519 = vadd.f32 %v479, %v513
    %v520 = vadd.f32 %v482, %v514
    %v521 = vadd.f32 %v487, %v515
    %v522 = vadd.f32 %v490, %v516
    %v523 = vadd.f32 %v495, %v517
    %v524 = vadd.f32 %v498, %v518
    %v525 = vmul.f32 %v519, 0.7978846
    %v526 = vmul.f32 %v520, 0.7978846
    %v527 = vmul.f32 %v521, 0.7978846
    %v528 = vmul.f32 %v522, 0.7978846
    %v529 = vmul.f32 %v523, 0.7978846
    %v530 = vmul.f32 %v524, 0.7978846
    %v531 = vtanh.pop %v525
    %v532 = vtanh.pop %v526
    %v533 = vtanh.pop %v527
    %v534 = vtanh.pop %v528
    %v535 = vtanh.pop %v529
    %v536 = vtanh.pop %v530
    %v537 = vadd.f32 %v531, 1.0
    %v538 = vadd.f32 %v532, 1.0
    %v539 = vadd.f32 %v533, 1.0
    %v540 = vadd.f32 %v534, 1.0
    %v541 = vadd.f32 %v535, 1.0
    %v542 = vadd.f32 %v536, 1.0
    %v543 = vmul.f32 %v537, 0.5
    %v544 = vmul.f32 %v538, 0.5
    %v545 = vmul.f32 %v539, 0.5
    %v546 = vmul.f32 %v540, 0.5
    %v547 = vmul.f32 %v541, 0.5
    %v548 = vmul.f32 %v542, 0.5
    %v549 = vmul.f32 %v479, %v543
    %v550 = vmul.f32 %v482, %v544
    %v551 = vmul.f32 %v487, %v545
    %v552 = vmul.f32 %v490, %v546
    %v553 = vmul.f32 %v495, %v547
    %v554 = vmul.f32 %v498, %v548
    %v555 = vld [vmem:[%s9] sm:$0x1]
    %v556 = vpack.c.bf16 %v550, %v549
    %v557 = vpack.c.bf16 %v552, %v551
    %v558 = vpack.c.bf16 %v554, %v553
    %vm559 = vcmask 523264
    %v561 = vsel %vm559, %v555, 0
    %v564 = vsel %vm559, %v556, 0
    %v567 = vsel %vm559, %v557, 0
    %v570 = vsel %vm559, %v558, 0
    %572 = vmatprep.subr.bf16.mxu0 0
    %573 = vmatpush1.bf16.xpose.msra.mxu0 0
    %574 = vmatprep.subr.bf16.mxu0 0
    %575 = vmatpush1.bf16.xpose.msra.mxu0 0
    %576 = vmatprep.subr.bf16.mxu0 0
    %577 = vmatpush1.bf16.xpose.msra.mxu0 0
    %578 = vmatprep.subr.bf16.mxu0 0
    %579 = vmatpush1.bf16.xpose.msra.mxu0 0
    %580 = vmatprep.subr.bf16.mxu0 0
    %581 = vmatpush1.bf16.xpose.msra.mxu0 0
    %582 = vmatprep.subr.bf16.mxu0 0
    %583 = vmatpush1.bf16.xpose.msra.mxu0 %v570
    %584 = vmatprep.subr.bf16.mxu0 0
    %585 = vmatpush1.bf16.xpose.msra.mxu0 %v567
    %586 = vmatprep.subr.bf16.mxu0 0
    %587 = vmatpush1.bf16.xpose.msra.mxu0 %v564
    %588 = vmatprep.subr.bf16.mxu0 0
    %589 = vmatpush2.bf16.xpose.msra.mxu0 0
    %590 = vmatprep.subr.bf16.mxu0 0
    %591 = vmatpush2.bf16.xpose.msra.mxu0 0
    %592 = vmatprep.subr.bf16.mxu0 0
    %593 = vmatpush2.bf16.xpose.msra.mxu0 0
    %594 = vmatprep.subr.bf16.mxu0 0
    %595 = vmatpush2.bf16.xpose.msra.mxu0 0
    %596 = vmatprep.subr.bf16.mxu0 0
    %597 = vmatpush2.bf16.xpose.msra.mxu0 0
    %598 = vmatprep.subr.bf16.mxu0 0
    %599 = vmatpush2.bf16.xpose.msra.mxu0 0
    %600 = vmatprep.subr.bf16.mxu0 0
    %601 = vmatpush2.bf16.xpose.msra.mxu0 0
    %602 = vmatprep.subr.bf16.mxu0 0
    %603 = vmatpush2.bf16.xpose.msra.mxu0 0
    %604 = vmatprep.mubr.bf16.mxu0 0
    %605 = vmatmul.mubr.bf16.gmra.mxu0 %v561
    %v606 = vpop.f32.mrf.mxu0
    %v607 = vadd.f32 0.0, %v606
    %v608 = vpop.f32.mrf.mxu0
    %v609 = vpop.f32.mrf.mxu0
    %v610 = vpop.f32.mrf.mxu0
    %611 = vdwg.mxu0
    %v612 = vld [vmem:[%s2] sm:$0x3]
    %v613 = vlaneseq
    %v614 = vshrl.u32 %v613, 7
    %v615 = vsub.s32 0, %v614
    %v616 = vrot.slane %v607, %v615
    %v617 = vadd.f32 %v616, %v612
    %vm618 = vcmask 386048
    %v619 = vsel %vm618, %v617, -inf
    %620 = vmax.xlane.f32.xlu0 %v619
    %v621 = vpop.xlane.xlu0 %620
    %v622 = vsub.f32 %v617, %v621
    %v623 = vmul.f32 %v622, 1.442695
    %v624 = vpow.pop %v623
    %v625 = vsel %vm618, %v624, 0.0
    %626 = vadd.xlane.f32.xlu0 %v625
    %v627 = vpop.xlane.xlu0 %626
    %v628 = vrcp.pop %v627
    %v629 = vmul.f32 %v624, %v628
    %v630 = vpack.c.bf16 %v629, %v629
    %v632 = vsel %vm294, %v630, 0
    %634 = vmatprep.subr.bf16.mxu0 0
    %635 = vmatpush1.bf16.msra.mxu0 0
    %636 = vmatprep.subr.bf16.mxu0 0
    %637 = vmatpush1.bf16.msra.mxu0 0
    %638 = vmatprep.subr.bf16.mxu0 0
    %639 = vmatpush1.bf16.msra.mxu0 0
    %640 = vmatprep.subr.bf16.mxu0 0
    %641 = vmatpush1.bf16.msra.mxu0 0
    %642 = vmatprep.subr.bf16.mxu0 0
    %643 = vmatpush1.bf16.msra.mxu0 0
    %644 = vmatprep.subr.bf16.mxu0 0
    %645 = vmatpush1.bf16.msra.mxu0 %v372
    %646 = vmatprep.subr.bf16.mxu0 0
    %647 = vmatpush1.bf16.msra.mxu0 %v371
    %648 = vmatprep.subr.bf16.mxu0 0
    %649 = vmatpush1.bf16.msra.mxu0 %v370
    %650 = vmatprep.subr.bf16.mxu0 0
    %651 = vmatpush2.bf16.msra.mxu0 0
    %652 = vmatprep.subr.bf16.mxu0 0
    %653 = vmatpush2.bf16.msra.mxu0 0
    %654 = vmatprep.subr.bf16.mxu0 0
    %655 = vmatpush2.bf16.msra.mxu0 0
    %656 = vmatprep.subr.bf16.mxu0 0
    %657 = vmatpush2.bf16.msra.mxu0 0
    %658 = vmatprep.subr.bf16.mxu0 0
    %659 = vmatpush2.bf16.msra.mxu0 0
    %660 = vmatprep.subr.bf16.mxu0 0
    %661 = vmatpush2.bf16.msra.mxu0 0
    %662 = vmatprep.subr.bf16.mxu0 0
    %663 = vmatpush2.bf16.msra.mxu0 0
    %664 = vmatprep.subr.bf16.mxu0 0
    %665 = vmatpush2.bf16.msra.mxu0 0
    %666 = vmatprep.mubr.bf16.mxu0 0
    %667 = vmatmul.mubr.bf16.gmra.mxu0 %v632
    %v668 = vpop.f32.mrf.mxu0
    %v669 = vadd.f32 0.0, %v668
    %v670 = vpop.f32.mrf.mxu0
    %v671 = vpop.f32.mrf.mxu0
    %v672 = vpop.f32.mrf.mxu0
    %673 = vdwg.mxu0
    %674 = vst [vmem:[#allocation9] sm:$0x3] %v669
    // Predicated region
    $region46: #{tpu_custom_call.1} parent=1 // pred_check
      _
    $region47: #{tpu_custom_call.1} parent=1 // pred_check_branch
      %676 = sbr.rel (0) target = $region49
    $region48: #{tpu_custom_call.1} parent=1 // pred_region
      %s678 = ssub.s32 256, 256
      %679 = vsyncadd [#allocation5], %s678
      %s680 = sshll.u32 [#allocation6], 4
      %s681 = int_to_ptr.vmem [resolvable:$true] %s680
      %686 = dma.vmem_to_hbm [thread:$0]  %s681, 256, %s10, [#allocation5], 128, 128, 8
    $region49: #{tpu_custom_call.1} parent=1 // pred_fallthru
      _
    // Predicated region
    $region50: #{tpu_custom_call.1} parent=1 // pred_check
      _
    $region51: #{tpu_custom_call.1} parent=1 // pred_check_branch
      %688 = sbr.rel (0) target = $region53
    $region52: #{tpu_custom_call.1} parent=1 // pred_region
      %s690 = ssub.s32 512, 512
      %691 = vsyncadd [#allocation8], %s690
      %s692 = sshll.u32 [#allocation7], 4
      %s693 = int_to_ptr.vmem [resolvable:$true] %s692
      %698 = dma.vmem_to_hbm [thread:$0]  %s693, 512, %s11, [#allocation8], 128, 128, 8
    $region53: #{tpu_custom_call.1} parent=1 // pred_fallthru
      _
    // Predicated region
    $region54: #{tpu_custom_call.1} parent=1 // pred_check
      _
    $region55: #{tpu_custom_call.1} parent=1 // pred_check_branch
      %700 = sbr.rel (0) target = $region57
    $region56: #{tpu_custom_call.1} parent=1 // pred_region
      %s702 = ssub.s32 32, 32
      %703 = vsyncadd [#allocation8], %s702
      %s705 = sshll.u32 [#allocation9], 4
      %s706 = int_to_ptr.vmem [resolvable:$true] %s705
      %708 = dma.vmem_to_hbm [thread:$0]  %s706, 32, %s12, [#allocation8]
    $region57: #{tpu_custom_call.1} parent=1 // pred_fallthru
      _
    // Predicated region
    $region58: #{tpu_custom_call.1} parent=1 // pred_check
      _
    $region59: #{tpu_custom_call.1} parent=1 // pred_check_branch
      %710 = sbr.rel (0) target = $region61
    $region60: #{tpu_custom_call.1} parent=1 // pred_region
      %711 = dma.done [#allocation5], 256
    $region61: #{tpu_custom_call.1} parent=1 // pred_fallthru
      _
    // Predicated region
    $region62: #{tpu_custom_call.1} parent=1 // pred_check
      _
    $region63: #{tpu_custom_call.1} parent=1 // pred_check_branch
      %713 = sbr.rel (0) target = $region65
    $region64: #{tpu_custom_call.1} parent=1 // pred_region
      %714 = dma.done [#allocation8], 512
    $region65: #{tpu_custom_call.1} parent=1 // pred_fallthru
      _
    // Predicated region
    $region66: #{tpu_custom_call.1} parent=1 // pred_check
      _
    $region67: #{tpu_custom_call.1} parent=1 // pred_check_branch
      %716 = sbr.rel (0) target = $region69
    $region68: #{tpu_custom_call.1} parent=1 // pred_region
      %717 = dma.done [#allocation8], 32
    $region69: #{tpu_custom_call.1} parent=1 // pred_fallthru
      _
    %718 = vsyncpa [#allocation4], 1
    %719 = vsyncpa [#allocation5], 1
    %720 = vsyncpa [#allocation8], 1

</llo_original>
